<compile_context>
chip_gen: v7x
topology: tpu7x:2x2x1
jax: 0.10.0
libtpu: 0.0.40
codegen_flags: <defaults>
</compile_context>

<pallas_src>
import functools
import math

import jax
import jax.numpy as jnp
from jax import lax
from jax.experimental import pallas as pl
from jax.experimental.pallas import tpu as pltpu


def _default_vmem_limit():
    # v5e/v6e: 128 MiB physical -> ask ~96 MiB; v7x: 64 MiB -> ask ~48 MiB.
    try:
        cap = getattr(pltpu.get_tpu_info(), "vmem_capacity_bytes", None)
        if cap:
            return int(min(cap * 3 // 4, 100 * 1024 * 1024))
    except Exception:
        pass
    return 48 * 1024 * 1024


VMEM_LIMIT = _default_vmem_limit()


def _cparams(semantics):
    return pltpu.CompilerParams(dimension_semantics=semantics,
                                vmem_limit_bytes=VMEM_LIMIT)


# --------------------------------------------------------------------------
# helpers
# --------------------------------------------------------------------------
def _full_spec(shape):
    n = len(shape)
    return pl.BlockSpec(shape, lambda *_: (0,) * n)


def _round_up(x, m):
    return ((x + m - 1) // m) * m


def _pad_rows(x2, tm):
    M = x2.shape[0]
    Mp = _round_up(M, tm)
    if Mp != M:
        x2 = jnp.pad(x2, ((0, Mp - M), (0, 0)))
    return x2, Mp


def _mm_bias_act(x, w, b, act):
    """bf16 MXU matmul with f32 accumulation, + bias, + optional activation."""
    y = jnp.dot(x.astype(jnp.bfloat16), w.astype(jnp.bfloat16),
                preferred_element_type=jnp.float32) + b
    if act == "relu":
        y = jnp.maximum(y, 0.0)
    elif act == "silu":
        y = y * jax.nn.sigmoid(y)
    return y


def _row_mask(i, tm, rows):
    ridx = lax.broadcasted_iota(jnp.int32, (tm, 1), 0) + i * tm
    return ridx < rows


def _tile_stats(y, valid):
    ym = jnp.where(valid, y, 0.0)
    return jnp.concatenate([jnp.sum(ym, axis=0, keepdims=True),
                            jnp.sum(ym * ym, axis=0, keepdims=True)],
                           axis=0)[None]                       # (1, 2, O)


# --------------------------------------------------------------------------
# dense: y = act(x @ w + b), row-tiled; optional per-tile norm statistics
# --------------------------------------------------------------------------
def _dense_kernel(x_ref, w_ref, b_ref, o_ref, *, act):
    o_ref[...] = _mm_bias_act(x_ref[...], w_ref[...], b_ref[...], act)


def _dense_stats_kernel(x_ref, w_ref, b_ref, o_ref, st_ref, *, act, rows, tm):
    i = pl.program_id(0)
    y = _mm_bias_act(x_ref[...], w_ref[...], b_ref[...], act)
    o_ref[...] = y
    st_ref[...] = _tile_stats(y, _row_mask(i, tm, rows))


def dense(x, w, b, act="none", with_stats=False, tile_m=1024):
    """x: [..., K], w: [K, O], b: [O] -> [..., O] (and optional (2, O) stats)."""
    K, O = w.shape
    lead = x.shape[:-1]
    x2 = x.reshape(-1, K).astype(jnp.bfloat16)
    M = x2.shape[0]
    tm = min(tile_m, _round_up(M, 8))
    x2, Mp = _pad_rows(x2, tm)
    nt = Mp // tm
    wf = w.astype(jnp.bfloat16)
    bf = b.reshape(1, O).astype(jnp.float32)
    in_specs = [pl.BlockSpec((tm, K), lambda i: (i, 0)),
                _full_spec((K, O)), _full_spec((1, O))]
    if with_stats:
        y, pstats = pl.pallas_call(
            functools.partial(_dense_stats_kernel, act=act, rows=M, tm=tm),
            grid=(nt,),
            in_specs=in_specs,
            out_specs=[pl.BlockSpec((tm, O), lambda i: (i, 0)),
                       pl.BlockSpec((1, 2, O), lambda i: (i, 0, 0))],
            out_shape=[jax.ShapeDtypeStruct((Mp, O), jnp.float32),
                       jax.ShapeDtypeStruct((nt, 2, O), jnp.float32)],
            compiler_params=_cparams(("parallel",)),
        )(x2, wf, bf)
        return y[:M].reshape(lead + (O,)), jnp.sum(pstats, axis=0)
    y = pl.pallas_call(
        functools.partial(_dense_kernel, act=act),
        grid=(nt,),
        in_specs=in_specs,
        out_specs=pl.BlockSpec((tm, O), lambda i: (i, 0)),
        out_shape=jax.ShapeDtypeStruct((Mp, O), jnp.float32),
        compiler_params=_cparams(("parallel",)),
    )(x2, wf, bf)
    return y[:M].reshape(lead + (O,))


# --------------------------------------------------------------------------
# MyLayerNorm: global mean / unbiased-variance normalize (+ optional SiLU),
# applied from precomputed (sum, sum^2) statistics.
# --------------------------------------------------------------------------
def _norm_kernel(x_ref, st_ref, o_ref, *, silu, eps, count):
    total = jnp.sum(st_ref[0:1, :], axis=-1, keepdims=True)     # (1, 1)
    totsq = jnp.sum(st_ref[1:2, :], axis=-1, keepdims=True)     # (1, 1)
    mean = total / count
    var = (totsq - count * mean * mean) / (count - 1.0)
    var = jnp.maximum(var, 0.0)
    inv = lax.rsqrt(var + eps)                                   # EUP
    y = (x_ref[...] - mean) * inv
    if silu:
        y = y * jax.nn.sigmoid(y)
    o_ref[...] = y


def global_norm_apply(x, stats, count, silu=False, eps=1e-4, tile_m=1024):
    lead = x.shape[:-1]
    O = x.shape[-1]
    x2 = x.reshape(-1, O).astype(jnp.float32)
    M = x2.shape[0]
    tm = min(tile_m, _round_up(M, 8))
    x2, Mp = _pad_rows(x2, tm)
    y = pl.pallas_call(
        functools.partial(_norm_kernel, silu=silu, eps=eps, count=float(count)),
        grid=(Mp // tm,),
        in_specs=[pl.BlockSpec((tm, O), lambda i: (i, 0)),
                  _full_spec((2, O))],
        out_specs=pl.BlockSpec((tm, O), lambda i: (i, 0)),
        out_shape=jax.ShapeDtypeStruct((Mp, O), jnp.float32),
        compiler_params=_cparams(("parallel",)),
    )(x2, stats)
    return y[:M].reshape(lead + (O,))


# --------------------------------------------------------------------------
# embedder: fused Linear -> SiLU -> Linear (+ per-tile norm statistics),
# followed by the global-norm/SiLU kernel.
# --------------------------------------------------------------------------
def _mlp_stats_kernel(x_ref, w1_ref, b1_ref, w2_ref, b2_ref, o_ref, st_ref,
                      *, rows, tm):
    i = pl.program_id(0)
    h = _mm_bias_act(x_ref[...], w1_ref[...], b1_ref[...], "silu")
    y = _mm_bias_act(h, w2_ref[...], b2_ref[...], "none")
    o_ref[...] = y
    st_ref[...] = _tile_stats(y, _row_mask(i, tm, rows))


def embedder(x, p, tile_m=1024):
    lead = x.shape[:-1]
    K = x.shape[-1]
    D = p["w2"].shape[1]
    x2 = x.reshape(-1, K).astype(jnp.bfloat16)
    M = x2.shape[0]
    tm = min(tile_m, _round_up(M, 8))
    x2, Mp = _pad_rows(x2, tm)
    nt = Mp // tm
    h, pstats = pl.pallas_call(
        functools.partial(_mlp_stats_kernel, rows=M, tm=tm),
        grid=(nt,),
        in_specs=[pl.BlockSpec((tm, K), lambda i: (i, 0)),
                  _full_spec((K, D)), _full_spec((1, D)),
                  _full_spec((D, D)), _full_spec((1, D))],
        out_specs=[pl.BlockSpec((tm, D), lambda i: (i, 0)),
                   pl.BlockSpec((1, 2, D), lambda i: (i, 0, 0))],
        out_shape=[jax.ShapeDtypeStruct((Mp, D), jnp.float32),
                   jax.ShapeDtypeStruct((nt, 2, D), jnp.float32)],
        compiler_params=_cparams(("parallel",)),
    )(x2,
      p["w1"].astype(jnp.bfloat16), p["b1"].reshape(1, D).astype(jnp.float32),
      p["w2"].astype(jnp.bfloat16), p["b2"].reshape(1, D).astype(jnp.float32))
    h = h[:M].reshape(lead + (D,))
    stats = jnp.sum(pstats, axis=0)
    return global_norm_apply(h, stats, count=M * D, silu=True)


# --------------------------------------------------------------------------
# fused IPA attention core (grid = (frame, query-tile)), head-batched.
# Pair bias / down_z / square mask are produced in-kernel from z and mask.
# --------------------------------------------------------------------------
def _ipa_attn_kernel(q_ref, k_ref, v_ref, qp_ref, kp_ref, vp_ref, z_ref,
                     mq_ref, mk_ref, hw_ref, wb_ref, bb_ref, wdz_ref, bdz_ref,
                     out_ref, *, H, C, Pqk, Pv, cz, cz4, inf):
    tq = q_ref.shape[1]
    N = k_ref.shape[1]
    s_qk = math.sqrt(1.0 / (3.0 * C))
    s_b = math.sqrt(1.0 / 3.0)

    # ---- pair bias from z (bf16 tile, read once): [H, tq, N] --------------
    zq = z_ref[0]                                    # [tq, N, cz] bf16
    z2 = zq.reshape(tq * N, cz)
    bias = lax.dot_general(wb_ref[...], z2,
                           (((0,), (1,)), ((), ())),
                           preferred_element_type=jnp.float32)   # [H, tq*N]
    bias = bias.reshape(H, tq, N) + bb_ref[...][:, :, None]

    # ---- scalar QK term, head-batched --------------------------------------
    q3 = q_ref[0].reshape(tq, H, C)                  # bf16
    k3 = k_ref[0].reshape(N, H, C)                   # bf16
    a = lax.dot_general(q3, k3, (((2,), (2,)), ((1,), (1,))),
                        preferred_element_type=jnp.float32)      # [H, tq, N]
    a = a * s_qk + s_b * bias

    # ---- point-distance term (f32, cancellation-sensitive) -----------------
    qp3 = qp_ref[0].reshape(tq, H, Pqk * 3)          # f32
    kp3 = kp_ref[0].reshape(N, H, Pqk * 3)           # f32
    qn = jnp.transpose(jnp.sum(qp3 * qp3, axis=-1))  # [H, tq]
    kn = jnp.transpose(jnp.sum(kp3 * kp3, axis=-1))  # [H, N]
    cross = lax.dot_general(qp3, kp3, (((2,), (2,)), ((1,), (1,))),
                            preferred_element_type=jnp.float32)  # [H, tq, N]
    d2 = qn[:, :, None] + kn[:, None, :] - 2.0 * cross
    hw = hw_ref[...]                                 # [H, 1]
    a = a - (0.5 * hw)[:, :, None] * d2

    # ---- square mask built from the 1-D residue mask -----------------------
    mq = mq_ref[0]                                   # [tq, 1]
    mk = mk_ref[0]                                   # [1, N]
    sqm = inf * (mq * mk - 1.0)                      # [tq, N]
    a = a + sqm[None, :, :]

    # ---- softmax ------------------------------------------------------------
    a = a - jnp.max(a, axis=-1, keepdims=True)
    e = jnp.exp(a)
    p = e * pl.reciprocal(jnp.sum(e, axis=-1, keepdims=True), approx=True)
    pb = p.astype(jnp.bfloat16)                      # [H, tq, N]

    # ---- outputs (head-batched, one lane-dense store) -----------------------
    v3 = v_ref[0].reshape(N, H, C)                   # bf16
    vp3 = vp_ref[0].reshape(N, H, Pv * 3)            # bf16
    ov = lax.dot_general(pb, v3, (((2,), (0,)), ((0,), (1,))),
                         preferred_element_type=jnp.float32)     # [H, tq, C]
    op = lax.dot_general(pb, vp3, (((2,), (0,)), ((0,), (1,))),
                         preferred_element_type=jnp.float32)     # [H, tq, Pv3]
    both = jnp.transpose(jnp.concatenate([ov, op], axis=-1), (1, 0, 2))
    o_part = both[:, :, :C].reshape(tq, H * C)
    opt_part = both[:, :, C:].reshape(tq, H * Pv * 3)

    # o_pair = (p . z) @ w_dz + b_dz  (z read once; down_z fused)
    pzagg = lax.dot_general(pb, zq, (((2,), (1,)), ((1,), (0,))),
                            preferred_element_type=jnp.float32)  # [tq, H, cz]
    opair = lax.dot_general(pzagg.astype(jnp.bfloat16).reshape(tq * H, cz),
                            wdz_ref[...], (((1,), (0,)), ((), ())),
                            preferred_element_type=jnp.float32)  # [tq*H, cz4]
    opair = opair.reshape(tq, H, cz4) + bdz_ref[...][None]
    opair_part = opair.reshape(tq, H * cz4)

    out_ref[0] = jnp.concatenate([o_part, opt_part, opair_part], axis=-1)


def ipa_attention(q, k, v, qp, kp, vp, z, mask, hw, wb, bb, wdz, bdz,
                  *, H, C, Pqk, Pv, cz):
    F_, N_, hc = q.shape
    cz4 = cz // 4
    hpq = H * Pqk * 3
    hv3 = H * Pv * 3
    dout = hc + hv3 + H * cz4
    inf = 1e5

    # query-axis tiling always applies (pad the query axis, keys stay at N)
    tq = 128 if N_ >= 128 else _round_up(N_, 8)
    Nq = _round_up(N_, tq)
    nq = Nq // tq

    mask_f = mask.astype(jnp.float32)
    mq = mask_f[:, :, None]                          # [F, N, 1]
    mk = mask_f[:, None, :]                          # [F, 1, N]

    def pad_q_axis(x):
        if Nq == N_:
            return x
        pads = [(0, 0)] * x.ndim
        pads[1] = (0, Nq - N_)
        return jnp.pad(x, pads)

    q_p, qp_p, z_p, mq_p = (pad_q_axis(q), pad_q_axis(qp),
                            pad_q_axis(z), pad_q_axis(mq))

    kernel = functools.partial(_ipa_attn_kernel, H=H, C=C, Pqk=Pqk, Pv=Pv,
                               cz=cz, cz4=cz4, inf=inf)
    out = pl.pallas_call(
        kernel,
        grid=(F_, nq),
        in_specs=[
            pl.BlockSpec((1, tq, hc), lambda f, i: (f, i, 0)),        # q
            pl.BlockSpec((1, N_, hc), lambda f, i: (f, 0, 0)),        # k
            pl.BlockSpec((1, N_, hc), lambda f, i: (f, 0, 0)),        # v
            pl.BlockSpec((1, tq, hpq), lambda f, i: (f, i, 0)),       # q_pts
            pl.BlockSpec((1, N_, hpq), lambda f, i: (f, 0, 0)),       # k_pts
            pl.BlockSpec((1, N_, hv3), lambda f, i: (f, 0, 0)),       # v_pts
            pl.BlockSpec((1, tq, N_, cz), lambda f, i: (f, i, 0, 0)), # z
            pl.BlockSpec((1, tq, 1), lambda f, i: (f, i, 0)),         # mask_q
            pl.BlockSpec((1, 1, N_), lambda f, i: (f, 0, 0)),         # mask_k
            _full_spec((H, 1)),                                       # hw
            _full_spec((cz, H)),                                      # w_b
            _full_spec((H, 1)),                                       # b_b
            _full_spec((cz, cz4)),                                    # w_dz
            _full_spec((1, cz4)),                                     # b_dz
        ],
        out_specs=pl.BlockSpec((1, tq, dout), lambda f, i: (f, i, 0)),
        out_shape=jax.ShapeDtypeStruct((F_, Nq, dout), jnp.float32),
        compiler_params=_cparams(("parallel", "parallel")),
    )(q_p, k, v, qp_p, kp, vp, z_p, mq_p, mk, hw, wb, bb, wdz, bdz)
    return out[:, :N_]


# --------------------------------------------------------------------------
# Rigid (quaternion) algebra — plain JAX glue
# --------------------------------------------------------------------------
def quat_to_rot(q):
    w, x, y, z = q[..., 0], q[..., 1], q[..., 2], q[..., 3]
    r0 = jnp.stack([w * w + x * x - y * y - z * z,
                    2 * (x * y - w * z), 2 * (x * z + w * y)], -1)
    r1 = jnp.stack([2 * (x * y + w * z),
                    w * w - x * x + y * y - z * z, 2 * (y * z - w * x)], -1)
    r2 = jnp.stack([2 * (x * z - w * y), 2 * (y * z + w * x),
                    w * w - x * x - y * y + z * z], -1)
    return jnp.stack([r0, r1, r2], -2)


def rigid_apply_pts(R, t, pts):                 # pts: [F,N,P,3]
    return jnp.einsum("fnij,fnpj->fnpi", R, pts) + t[:, :, None, :]


def rigid_invert_apply_pts(R, t, pts):          # pts: [F,N,H,P,3]
    return jnp.einsum("fnij,fnhpi->fnhpj", R, pts - t[:, :, None, None, :])


def quat_mul_vec(q, v):
    w, x, y, z = q[..., 0], q[..., 1], q[..., 2], q[..., 3]
    b1, b2, b3 = v[..., 0], v[..., 1], v[..., 2]
    return jnp.stack([-x * b1 - y * b2 - z * b3,
                      w * b1 + y * b3 - z * b2,
                      w * b2 + z * b1 - x * b3,
                      w * b3 + x * b2 - y * b1], -1)


def compose_q_update_vec(rigid7, update6, update_mask):
    # TODO(synk): Rigid class source not provided; follows OpenFold/FrameDiff
    # semantics (rotation update unmasked, translation update masked).
    quats, trans = rigid7[..., :4], rigid7[..., 4:]
    q_vec, t_vec = update6[..., :3], update6[..., 3:]
    new_quats = quats + quat_mul_vec(quats, q_vec)
    new_quats = new_quats / jnp.sqrt(jnp.sum(new_quats ** 2, -1, keepdims=True))
    R = quat_to_rot(quats)
    trans_update = jnp.einsum("...ij,...j->...i", R, t_vec) * update_mask
    return jnp.concatenate([new_quats, trans + trans_update], -1)


# --------------------------------------------------------------------------
# InvariantPointAttention forward (fused projections + fused attention)
# --------------------------------------------------------------------------
def ipa_forward(s, z, rigid7, mask, p, cfg):
    F_, N_, _ = s.shape
    H, C = cfg["no_heads"], cfg["c_hidden"]
    Pqk, Pv = cfg["no_qk_points"], cfg["no_v_points"]
    cz = cfg["c_z"]
    cz4 = cz // 4
    eps = 1e-8
    hc = H * C
    hpq = H * Pqk * 3
    hpkv = H * (Pqk + Pv) * 3

    quats, trans = rigid7[..., :4], rigid7[..., 4:]
    R = quat_to_rot(quats)

    # fused q / kv / q_pts / kv_pts projections: one lane-dense matmul over s
    w_all = jnp.concatenate([p["w_q"], p["w_kv"], p["w_qp"], p["w_kvp"]], axis=1)
    b_all = jnp.concatenate([p["b_q"], p["b_kv"], p["b_qp"], p["b_kvp"]], axis=0)
    proj = dense(s, w_all, b_all)                                # [F,N, 3hc+hpq+hpkv]

    q = proj[..., :hc]
    kv = proj[..., hc:3 * hc].reshape(F_, N_, H, 2 * C)
    k = kv[..., :C].reshape(F_, N_, hc)
    v = kv[..., C:].reshape(F_, N_, hc)
    qp_raw = proj[..., 3 * hc:3 * hc + hpq]
    kvp_raw = proj[..., 3 * hc + hpq:]

    def make_pts(raw, npts):
        pts = jnp.stack(jnp.split(raw, 3, axis=-1), axis=-1)     # [F,N,H*npts,3]
        pts = rigid_apply_pts(R, trans, pts)
        return pts.reshape(F_, N_, H, npts, 3)

    q_pts = make_pts(qp_raw, Pqk)
    kv_pts = make_pts(kvp_raw, Pqk + Pv)
    k_pts = kv_pts[..., :Pqk, :]
    v_pts = kv_pts[..., Pqk:, :]

    hw = jax.nn.softplus(p["head_weights"]) * math.sqrt(
        1.0 / (3.0 * (Pqk * 9.0 / 2.0)))
    hw = hw.reshape(H, 1).astype(jnp.float32)

    out = ipa_attention(
        q.astype(jnp.bfloat16), k.astype(jnp.bfloat16), v.astype(jnp.bfloat16),
        q_pts.reshape(F_, N_, hpq),                              # f32 (points)
        k_pts.reshape(F_, N_, hpq),
        v_pts.reshape(F_, N_, H * Pv * 3).astype(jnp.bfloat16),
        z.astype(jnp.bfloat16), mask, hw,
        p["w_b"].astype(jnp.bfloat16),
        p["b_b"].reshape(H, 1).astype(jnp.float32),
        p["w_dz"].astype(jnp.bfloat16),
        p["b_dz"].reshape(1, cz4).astype(jnp.float32),
        H=H, C=C, Pqk=Pqk, Pv=Pv, cz=cz)

    o = out[..., :hc]
    o_pt_flat = out[..., hc:hc + H * Pv * 3]
    o_pair = out[..., hc + H * Pv * 3:]

    o_pt_ti = o_pt_flat.reshape(F_, N_, H, Pv, 3)                # global frame
    o_pt = rigid_invert_apply_pts(R, trans, o_pt_ti)             # local frame

    o_pt_norm = jnp.sqrt(jnp.sum(o_pt ** 2, -1) + eps).reshape(F_, N_, H * Pv)
    o_pt_norm_ti = jnp.sqrt(jnp.sum(o_pt_ti ** 2, -1) + eps).reshape(
        F_, N_, H * Pv)
    o_pt_r = o_pt.reshape(F_, N_, H * Pv, 3)
    o_pt_ti_r = o_pt_ti.reshape(F_, N_, H * Pv, 3)

    o_feats = jnp.concatenate(
        [o,
         o_pt_r[..., 0], o_pt_r[..., 1], o_pt_r[..., 2], o_pt_norm,
         o_pair,
         o_pt_ti_r[..., 0], o_pt_ti_r[..., 1], o_pt_ti_r[..., 2], o_pt_norm_ti],
        axis=-1)
    out_s, stats = dense(o_feats, p["w_out"], p["b_out"], with_stats=True)
    return out_s, stats


# --------------------------------------------------------------------------
# ConvNet: 5x5 conv with the width taps folded into the contraction
# (5 bf16 matmuls, K = 5*Cin), manually double-buffered HBM->VMEM halo DMA,
# per-frame accumulator, ReLU + residual fused.
# --------------------------------------------------------------------------
def _conv5x5_kernel(*refs, tf, N, Cin, Cout, relu, has_res):
    if has_res:
        x_hbm, w_ref, b_ref, res_ref, o_ref, xbuf, sem = refs
    else:
        x_hbm, w_ref, b_ref, o_ref, xbuf, sem = refs
        res_ref = None
    i = pl.program_id(0)
    n_tiles = pl.num_programs(0)
    slot = i % 2

    @pl.when(i == 0)
    def _():
        pltpu.make_async_copy(x_hbm.at[pl.ds(0, tf + 4)],
                              xbuf.at[0], sem.at[0]).start()

    pltpu.make_async_copy(x_hbm.at[pl.ds(i * tf, tf + 4)],
                          xbuf.at[slot], sem.at[slot]).wait()

    @pl.when(i + 1 < n_tiles)
    def _():
        nxt = 1 - slot
        pltpu.make_async_copy(x_hbm.at[pl.ds((i + 1) * tf, tf + 4)],
                              xbuf.at[nxt], sem.at[nxt]).start()

    xv = xbuf.at[slot]                             # VMEM view [tf+4, N+4, Cin] bf16
    bvec = b_ref[...]                              # (1, Cout) f32
    for f0 in range(tf):                           # bounded accumulator per frame
        acc = jnp.zeros((N, Cout), jnp.float32)
        for df in range(5):
            row = xv[f0 + df]                      # [N+4, Cin] bf16
            cols = jnp.concatenate([row[dn:dn + N, :] for dn in range(5)],
                                   axis=-1)        # [N, 5*Cin]
            acc = acc + jnp.dot(cols, w_ref[df],
                                preferred_element_type=jnp.float32)
        y = acc + bvec
        if relu:
            y = jnp.maximum(y, 0.0)
        if has_res:
            y = y + res_ref[f0]
        o_ref[f0] = y


def conv5x5(x, w, b, residual=None, relu=True, tile_f=8):
    F_, N_, Cin = x.shape
    Cout = w.shape[-1]
    tf = min(tile_f, F_)
    n_tiles = pl.cdiv(F_, tf)
    Fp = n_tiles * tf
    xp = jnp.pad(x.astype(jnp.bfloat16), ((2, 2 + Fp - F_), (2, 2), (0, 0)))
    w5 = w.reshape(5, 5 * Cin, Cout).astype(jnp.bfloat16)
    b2 = b.reshape(1, Cout).astype(jnp.float32)

    inputs = [xp, w5, b2]
    in_specs = [pl.BlockSpec(memory_space=pl.ANY),
                _full_spec((5, 5 * Cin, Cout)),
                _full_spec((1, Cout))]
    if residual is not None:
        rp = residual.astype(jnp.float32)
        if Fp != F_:
            rp = jnp.pad(rp, ((0, Fp - F_), (0, 0), (0, 0)))
        inputs.append(rp)
        in_specs.append(pl.BlockSpec((tf, N_, Cout), lambda i: (i, 0, 0)))

    out = pl.pallas_call(
        functools.partial(_conv5x5_kernel, tf=tf, N=N_, Cin=Cin, Cout=Cout,
                          relu=relu, has_res=residual is not None),
        grid=(n_tiles,),
        in_specs=in_specs,
        out_specs=pl.BlockSpec((tf, N_, Cout), lambda i: (i, 0, 0)),
        out_shape=jax.ShapeDtypeStruct((Fp, N_, Cout), jnp.float32),
        scratch_shapes=[pltpu.VMEM((2, tf + 4, N_ + 4, Cin), jnp.bfloat16),
                        pltpu.SemaphoreType.DMA((2,))],
        compiler_params=_cparams(("arbitrary",)),
    )(*inputs)
    return out[:F_]


def convnet(x, conv_params):
    # x: [F, N, D] treated as image H=F, W=N, channels D
    # block: x = relu(conv2(relu(conv1(x)))) + x   (matches the PyTorch Sequential)
    for blk in conv_params:
        h = conv5x5(x, blk["w1"], blk["b1"], residual=None, relu=True)
        x = conv5x5(h, blk["w2"], blk["b2"], residual=x, relu=True)
    return x


# --------------------------------------------------------------------------
# DFOLDIpaScore forward
# --------------------------------------------------------------------------
def dfold_ipa_score_forward(params, input_feats, cfg):
    F_, N_ = input_feats["rigids_0"].shape[0], input_feats["rigids_0"].shape[1]
    D = cfg["node_embed_size"]
    c_s = cfg["c_s"]

    node_mask = input_feats["res_mask"].astype(jnp.float32)
    diffuse_mask = (1.0 - input_feats["fixed_mask"].astype(jnp.float32)) * node_mask

    def roll_last(x):
        return jnp.concatenate([x[:-1], x[-2:-1]], axis=0)

    nf = F_
    curr_rigids = roll_last(input_feats["rigids_0"].astype(jnp.float32))

    force = roll_last(input_feats["force"].astype(jnp.float32))
    force_embed = embedder(force, params["force_embeder"])

    vel = roll_last(input_feats["vel"].astype(jnp.float32))
    vel_embed = embedder(vel, params["vel_embeder"])

    node_embed = input_feats["seq_idx"][0:1][..., None].astype(jnp.float32)
    node_embed = embedder(node_embed, params["index_embeder"])            # [1,N,D]
    node_embed = jnp.broadcast_to(node_embed, (nf, N_, D)) + \
        input_feats["expand_node_repr"].astype(jnp.float32)

    edge_embed = input_feats["expand_edge_repr"].astype(jnp.float32)

    angle = input_feats["torsion_angles_sin_cos"].astype(jnp.float32)
    angle_mask = input_feats["torsion_angles_mask"].astype(jnp.float32)
    angle = angle * angle_mask[..., None]
    angle = roll_last(angle)
    na = angle.shape[-2]
    angle = angle.reshape(nf, -1, na * 2)
    angle_embed = embedder(angle, params["angle_embeder"])

    init_node_feat = None
    rigid_update = None
    node_feat = None
    for b in range(cfg["num_blocks"]):
        spatial_curr_rigids = curr_rigids
        rigids_embed = embedder(spatial_curr_rigids, params["rigid_embeder"])
        ipa_out, ipa_stats = ipa_forward(node_embed, edge_embed,
                                         spatial_curr_rigids, node_mask,
                                         params["ipa"][b], cfg)
        all_ipa_embed = global_norm_apply(ipa_out, ipa_stats,
                                          count=nf * N_ * c_s, silu=False)
        node_feat = jnp.concatenate(
            [rigids_embed, all_ipa_embed, force_embed, vel_embed, angle_embed],
            axis=-1)
        node_feat = convnet(node_feat, params["conv_0"])
        # rigid_update[:-1] is zeroed by the reference -> only project frame -1
        ru_last = dense(node_feat[-1:], params["bb"][b]["w"], params["bb"][b]["b"])
        rigid_update = jnp.concatenate(
            [jnp.zeros((nf - 1,) + ru_last.shape[1:], ru_last.dtype), ru_last],
            axis=0)
        curr_rigids = compose_q_update_vec(curr_rigids, rigid_update,
                                           diffuse_mask[..., None])
        if b == 0:
            init_node_feat = node_feat

    # TODO(synk): AngleResnet and diffuser.calc_rot_score / calc_trans_score are
    # external classes whose sources are not provided; the angles / rot_score /
    # trans_score outputs are therefore omitted.
    final_rigids = jnp.concatenate(
        [curr_rigids[..., :4],
         curr_rigids[..., 4:] / cfg["coordinate_scaling"]], axis=-1)

    return {"final_rigids": final_rigids,
            "rigid_update": rigid_update,
            "node_feat": node_feat,
            "init_node_feat": init_node_feat}


# --------------------------------------------------------------------------
# deterministic parameter construction (shapes from the module's __init__)
# --------------------------------------------------------------------------
def init_params(key, cfg):
    D = cfg["node_embed_size"]
    c_s, c_z = cfg["c_s"], cfg["c_z"]
    H, C = cfg["no_heads"], cfg["c_hidden"]
    Pqk, Pv = cfg["no_qk_points"], cfg["no_v_points"]
    keys = iter(jax.random.split(key, 256))

    def wb(din, dout, scale=0.1):
        w = jax.random.normal(next(keys), (din, dout), jnp.float32) * scale
        bvec = jax.random.normal(next(keys), (dout,), jnp.float32) * scale
        return w, bvec

    def mlp(din, dout):
        w1, b1 = wb(din, dout)
        w2, b2 = wb(dout, dout)
        return {"w1": w1, "b1": b1, "w2": w2, "b2": b2}

    hc, hpq, hpkv = H * C, H * Pqk * 3, H * (Pqk + Pv) * 3
    cz4 = c_z // 4
    concat_out = cz4 + C + Pv * 8

    def ipa_params():
        wq, bq = wb(c_s, hc)
        wkv, bkv = wb(c_s, 2 * hc)
        wqp, bqp = wb(c_s, hpq)
        wkvp, bkvp = wb(c_s, hpkv)
        wbm, bbm = wb(c_z, H)
        wdz, bdz = wb(c_z, cz4)
        wout, bout = wb(H * concat_out, c_s)
        return {"w_q": wq, "b_q": bq, "w_kv": wkv, "b_kv": bkv,
                "w_qp": wqp, "b_qp": bqp, "w_kvp": wkvp, "b_kvp": bkvp,
                "w_b": wbm, "b_b": bbm, "w_dz": wdz, "b_dz": bdz,
                "w_out": wout, "b_out": bout,
                "head_weights": jnp.full((H,), 0.541324854612918, jnp.float32)}

    dim = 5 * c_s

    def conv_blk():
        w1 = jax.random.normal(next(keys), (5, 5, dim, dim // 2), jnp.float32) * 0.05
        b1 = jax.random.normal(next(keys), (dim // 2,), jnp.float32) * 0.05
        w2 = jax.random.normal(next(keys), (5, 5, dim // 2, dim), jnp.float32) * 0.05
        b2 = jax.random.normal(next(keys), (dim,), jnp.float32) * 0.05
        return {"w1": w1, "b1": b1, "w2": w2, "b2": b2}

    params = {
        "force_embeder": mlp(3, D),
        "vel_embeder": mlp(3, D),
        "index_embeder": mlp(1, D),
        "rigid_embeder": mlp(7, D),
        "angle_embeder": mlp(14, D),
        "ipa": [ipa_params() for _ in range(cfg["num_blocks"])],
        "bb": [dict(zip(("w", "b"), wb(5 * c_s, 6)))
               for _ in range(cfg["num_blocks"])],
        "conv_0": [conv_blk() for _ in range(4)],
    }
    return params


# --------------------------------------------------------------------------
# main
# --------------------------------------------------------------------------
if __name__ == "__main__":
    cfg = {"c_s": 16, "c_z": 8, "c_hidden": 8, "no_heads": 2,
           "no_qk_points": 4, "no_v_points": 4, "num_blocks": 1,
           "coordinate_scaling": 0.1, "node_embed_size": 16}
    F_, N_, NA = 4, 8, 7

    key = jax.random.PRNGKey(0)
    kparam, *ks = jax.random.split(key, 16)
    params = init_params(kparam, cfg)

    def unit_quat_rigids(k, lead):
        q = jax.random.normal(k, lead + (4,), jnp.float32)
        q = q / jnp.sqrt(jnp.sum(q ** 2, -1, keepdims=True))
        t = jax.random.normal(jax.random.fold_in(k, 1), lead + (3,), jnp.float32)
        return jnp.concatenate([q, t], -1)

    input_feats = {
        "t": jnp.linspace(0.1, 0.9, F_),
        "res_mask": jnp.ones((F_, N_), jnp.float32).at[:, -1].set(0.0),
        "fixed_mask": jnp.zeros((F_, N_), jnp.float32),
        "rigids_t": unit_quat_rigids(ks[0], (F_, N_)),
        "rigids_0": unit_quat_rigids(ks[1], (F_, N_)),
        "force": jax.random.normal(ks[2], (F_, N_, 3), jnp.float32),
        "vel": jax.random.normal(ks[3], (F_, N_, 3), jnp.float32),
        "seq_idx": jnp.tile(jnp.arange(N_, dtype=jnp.float32)[None, :], (F_, 1)),
        "node_repr": jnp.zeros((N_, cfg["c_s"]), jnp.float32),
        "expand_node_repr": jax.random.normal(ks[4], (F_, N_, cfg["c_s"]),
                                              jnp.float32) * 0.5,
        "expand_edge_repr": jax.random.normal(ks[5], (F_, N_, N_, cfg["c_z"]),
                                              jnp.float32) * 0.5,
        "torsion_angles_sin_cos": jax.random.normal(ks[6], (F_, N_, NA, 2),
                                                    jnp.float32),
        "torsion_angles_mask": jnp.ones((F_, N_, NA), jnp.float32),
    }

    out = dfold_ipa_score_forward(params, input_feats, cfg)
    jax.block_until_ready(out["final_rigids"])
    jax.block_until_ready(out["rigid_update"])
    jax.block_until_ready(out["node_feat"])
    print("KERNEL_OK")
</pallas_src>

<mosaic_0001>
module attributes {stable_mosaic.version = 11 : i64} {
  func.func @_mlp_stats_kernel(%arg0: i32, %arg1: memref<32x3xbf16, #tpu.memory_space<vmem>>, %arg2: memref<3x16xbf16, #tpu.memory_space<vmem>>, %arg3: memref<1x16xf32, #tpu.memory_space<vmem>>, %arg4: memref<16x16xbf16, #tpu.memory_space<vmem>>, %arg5: memref<1x16xf32, #tpu.memory_space<vmem>>, %arg6: memref<32x16xf32, #tpu.memory_space<vmem>>, %arg7: memref<1x2x16xf32, #tpu.memory_space<vmem>>) attributes {dimension_semantics = [#tpu.dimension_semantics<parallel>], iteration_bounds = array<i64: 1>, scalar_prefetch = 0 : i64, scratch_operands = 0 : i64, tpu.core_type = #tpu.core_type<tc>, window_params = [{transform_indices = @transform_0, window_bounds = array<i64: 32, 3>}, {pipeline_mode = #tpu.pipeline_mode<synchronous>, transform_indices = @transform_1, window_bounds = array<i64: 3, 16>}, {pipeline_mode = #tpu.pipeline_mode<synchronous>, transform_indices = @transform_2, window_bounds = array<i64: 1, 16>}, {pipeline_mode = #tpu.pipeline_mode<synchronous>, transform_indices = @transform_3, window_bounds = array<i64: 16, 16>}, {pipeline_mode = #tpu.pipeline_mode<synchronous>, transform_indices = @transform_4, window_bounds = array<i64: 1, 16>}, {transform_indices = @transform_5, window_bounds = array<i64: 32, 16>}, {transform_indices = @transform_6, window_bounds = array<i64: 1, 2, 16>}]} {
    %c0 = arith.constant 0 : index
    %c0_0 = arith.constant 0 : index
    %0 = vector.load %arg1[%c0, %c0_0] : memref<32x3xbf16, #tpu.memory_space<vmem>>, vector<32x3xbf16>
    %c0_1 = arith.constant 0 : index
    %c0_2 = arith.constant 0 : index
    %1 = vector.load %arg2[%c0_1, %c0_2] : memref<3x16xbf16, #tpu.memory_space<vmem>>, vector<3x16xbf16>
    %c0_3 = arith.constant 0 : index
    %c0_4 = arith.constant 0 : index
    %2 = vector.load %arg3[%c0_3, %c0_4] : memref<1x16xf32, #tpu.memory_space<vmem>>, vector<1x16xf32>
    %cst = arith.constant dense<0.000000e+00> : vector<32x16xf32>
    %3 = tpu.matmul %0, %1, %cst {dimension_numbers = #tpu.dot_dimension_numbers<[1], [0], [0], [1], [0, 0, 1, 1], [], []>} : vector<32x3xbf16>, vector<3x16xbf16>, vector<32x16xf32> -> vector<32x16xf32>
    %4 = vector.broadcast %2 : vector<1x16xf32> to vector<32x16xf32>
    %5 = arith.addf %3, %4 : vector<32x16xf32>
    %6 = arith.negf %5 : vector<32x16xf32>
    %7 = math.exp %6 : vector<32x16xf32>
    %cst_5 = arith.constant 1.000000e+00 : f32
    %8 = vector.broadcast %cst_5 : f32 to vector<32x16xf32>
    %9 = arith.addf %8, %7 : vector<32x16xf32>
    %10 = arith.divf %8, %9 : vector<32x16xf32>
    %11 = arith.mulf %5, %10 : vector<32x16xf32>
    %c0_6 = arith.constant 0 : index
    %c0_7 = arith.constant 0 : index
    %12 = vector.load %arg4[%c0_6, %c0_7] : memref<16x16xbf16, #tpu.memory_space<vmem>>, vector<16x16xbf16>
    %c0_8 = arith.constant 0 : index
    %c0_9 = arith.constant 0 : index
    %13 = vector.load %arg5[%c0_8, %c0_9] : memref<1x16xf32, #tpu.memory_space<vmem>>, vector<1x16xf32>
    %14 = arith.truncf %11 : vector<32x16xf32> to vector<32x16xbf16>
    %cst_10 = arith.constant dense<0.000000e+00> : vector<32x16xf32>
    %15 = tpu.matmul %14, %12, %cst_10 {dimension_numbers = #tpu.dot_dimension_numbers<[1], [0], [0], [1], [0, 0, 1, 1], [], []>} : vector<32x16xbf16>, vector<16x16xbf16>, vector<32x16xf32> -> vector<32x16xf32>
    %16 = vector.broadcast %13 : vector<1x16xf32> to vector<32x16xf32>
    %17 = arith.addf %15, %16 : vector<32x16xf32>
    %c0_11 = arith.constant 0 : index
    %c0_12 = arith.constant 0 : index
    %18 = vector.load %arg6[%c0_11, %c0_12] : memref<32x16xf32, #tpu.memory_space<vmem>>, vector<32x16xf32>
    tpu.vector_store %arg6[%c0_11, %c0_12], %17 {strides = array<i32>} : memref<32x16xf32, #tpu.memory_space<vmem>>, vector<32x16xf32>,
    %19 = tpu.iota {dimensions = array<i32: 0>} : vector<32x1xi32>
    %c32_i32 = arith.constant 32 : i32
    %20 = arith.muli %arg0, %c32_i32 : i32
    %21 = vector.broadcast %20 : i32 to vector<32x1xi32>
    %22 = arith.addi %19, %21 : vector<32x1xi32>
    %c32_i32_13 = arith.constant 32 : i32
    %23 = vector.broadcast %c32_i32_13 : i32 to vector<32x1xi32>
    %24 = arith.cmpi slt, %22, %23 : vector<32x1xi32>
    %cst_14 = arith.constant 0.000000e+00 : f32
    %25 = vector.shape_cast %24 : vector<32x1xi1> to vector<32x1xi1>
    %26 = vector.broadcast %25 : vector<32x1xi1> to vector<32x16xi1>
    %27 = vector.broadcast %cst_14 : f32 to vector<32x16xf32>
    %28 = arith.select %26, %17, %27 : vector<32x16xi1>, vector<32x16xf32>
    %cst_15 = arith.constant dense<0.000000e+00> : vector<16xf32>
    %29 = vector.multi_reduction <add>, %28, %cst_15 [0] : vector<32x16xf32> to vector<16xf32>
    %30 = vector.shape_cast %29 : vector<16xf32> to vector<1x16xf32>
    %31 = arith.mulf %28, %28 : vector<32x16xf32>
    %cst_16 = arith.constant dense<0.000000e+00> : vector<16xf32>
    %32 = vector.multi_reduction <add>, %31, %cst_16 [0] : vector<32x16xf32> to vector<16xf32>
    %33 = vector.shape_cast %32 : vector<16xf32> to vector<1x16xf32>
    %34 = tpu.concatenate %30, %33 in 0 : vector<1x16xf32>, vector<1x16xf32> -> vector<2x16xf32>
    %35 = vector.shape_cast %34 : vector<2x16xf32> to vector<1x2x16xf32>
    %c0_17 = arith.constant 0 : index
    %c0_18 = arith.constant 0 : index
    %c0_19 = arith.constant 0 : index
    %36 = vector.load %arg7[%c0_17, %c0_18, %c0_19] : memref<1x2x16xf32, #tpu.memory_space<vmem>>, vector<1x2x16xf32>
    tpu.vector_store %arg7[%c0_17, %c0_18, %c0_19], %35 {strides = array<i32>} : memref<1x2x16xf32, #tpu.memory_space<vmem>>, vector<1x2x16xf32>,
    return
  }
  func.func @transform_0(%arg0: i32) -> (i32, i32) {
    %c0_i32 = arith.constant 0 : i32
    %c0_i32_0 = arith.constant 0 : i32
    return %arg0, %c0_i32 : i32, i32
  }
  func.func @transform_1(%arg0: i32) -> (i32, i32) {
    %c0_i32 = arith.constant 0 : i32
    %c0_i32_0 = arith.constant 0 : i32
    %c0_i32_1 = arith.constant 0 : i32
    return %c0_i32, %c0_i32_0 : i32, i32
  }
  func.func @transform_2(%arg0: i32) -> (i32, i32) {
    %c0_i32 = arith.constant 0 : i32
    %c0_i32_0 = arith.constant 0 : i32
    %c0_i32_1 = arith.constant 0 : i32
    return %c0_i32, %c0_i32_0 : i32, i32
  }
  func.func @transform_3(%arg0: i32) -> (i32, i32) {
    %c0_i32 = arith.constant 0 : i32
    %c0_i32_0 = arith.constant 0 : i32
    %c0_i32_1 = arith.constant 0 : i32
    return %c0_i32, %c0_i32_0 : i32, i32
  }
  func.func @transform_4(%arg0: i32) -> (i32, i32) {
    %c0_i32 = arith.constant 0 : i32
    %c0_i32_0 = arith.constant 0 : i32
    %c0_i32_1 = arith.constant 0 : i32
    return %c0_i32, %c0_i32_0 : i32, i32
  }
  func.func @transform_5(%arg0: i32) -> (i32, i32) {
    %c0_i32 = arith.constant 0 : i32
    %c0_i32_0 = arith.constant 0 : i32
    return %arg0, %c0_i32 : i32, i32
  }
  func.func @transform_6(%arg0: i32) -> (i32, i32, i32) {
    %c0_i32 = arith.constant 0 : i32
    %c0_i32_0 = arith.constant 0 : i32
    %c0_i32_1 = arith.constant 0 : i32
    return %arg0, %c0_i32, %c0_i32_0 : i32, i32, i32
  }
}

</mosaic_0001>

<llo_original>
// kernel: tpu_custom_call.1
$region0: #{tpu_custom_call.1}
  #allocation0 [shape = 'u32[]', space=smem, size = 0x4, offset = 0x4, fixed_abs, tag = 'smem constant byte address 0x4 - core index']
  #allocation1 [shape = 'u32[144,128]{1,0:T(1,128)}', space=vmem, size = 0x12000, scoped, tag = 'internal scratch']
  %s0 = inlined_call_operand.vmem [shape: bf16[32,3], index: 0, kind: input, shape index: {}]
  %s1 = inlined_call_operand.vmem [shape: bf16[3,16], index: 1, kind: input, shape index: {}]
  %s2 = inlined_call_operand.vmem [shape: f32[1,16], index: 2, kind: input, shape index: {}]
  %s3 = inlined_call_operand.vmem [shape: bf16[16,16], index: 3, kind: input, shape index: {}]
  %s4 = inlined_call_operand.vmem [shape: f32[1,16], index: 4, kind: input, shape index: {}]
  %s5 = inlined_call_operand.vmem [shape: f32[32,16], index: 5, kind: output, shape index: {0}]
  %s6 = inlined_call_operand.hbm [shape: f32[1,2,16], index: 6, kind: output, shape index: {1}]
  %7 = xla_tuple %s5, %s6
  %s8 = sld [smem:[#allocation0]]
  $region38: #{tpu_custom_call.1} parent=0
    _
  %s10 = ssub.s32 1, %s8
  %s11 = scalar_select 0, %s10, %s8
  $region1: #{tpu_custom_call.1} parent=0
    #allocation2 [shape = 'u8[1024]{0}', space=vmem, size = 0x400, scoped, tag = 'output window, operand 1, single buffered']
    #allocation3 [shape = 's32[1]{0}', space=sflag, size = 0x4, scoped, tag = 'scoped memory for tpu_custom_call.1']
    %12 = vsyncpa [#allocation3], 0
    // Predicated region
    $region2: #{tpu_custom_call.1} parent=1 // pred_check
      _
    $region3: #{tpu_custom_call.1} parent=1 // pred_check_branch
      %14 = sbr.rel (0) target = $region5
    $region4: #{tpu_custom_call.1} parent=1 // pred_region
      _
    $region5: #{tpu_custom_call.1} parent=1 // pred_fallthru
      _
    // Predicated region
    $region6: #{tpu_custom_call.1} parent=1 // pred_check
      _
    $region7: #{tpu_custom_call.1} parent=1 // pred_check_branch
      %16 = sbr.rel (0) target = $region9
    $region8: #{tpu_custom_call.1} parent=1 // pred_region
      _
    $region9: #{tpu_custom_call.1} parent=1 // pred_fallthru
      _
    // Predicated region
    $region10: #{tpu_custom_call.1} parent=1 // pred_check
      _
    $region11: #{tpu_custom_call.1} parent=1 // pred_check_branch
      %18 = sbr.rel (0) target = $region13
    $region12: #{tpu_custom_call.1} parent=1 // pred_region
      _
    $region13: #{tpu_custom_call.1} parent=1 // pred_fallthru
      _
    // Predicated region
    $region14: #{tpu_custom_call.1} parent=1 // pred_check
      _
    $region15: #{tpu_custom_call.1} parent=1 // pred_check_branch
      %20 = sbr.rel (0) target = $region17
    $region16: #{tpu_custom_call.1} parent=1 // pred_region
      _
    $region17: #{tpu_custom_call.1} parent=1 // pred_fallthru
      _
    // Predicated region
    $region18: #{tpu_custom_call.1} parent=1 // pred_check
      _
    $region19: #{tpu_custom_call.1} parent=1 // pred_check_branch
      %22 = sbr.rel (0) target = $region21
    $region20: #{tpu_custom_call.1} parent=1 // pred_region
      _
    $region21: #{tpu_custom_call.1} parent=1 // pred_fallthru
      _
    %v24 = vld [vmem:[%s0] sm:$0xf]
    %v25 = vld [vmem:[%s0 + $0x4] sm:$0xf]
    %v26 = vld [vmem:[%s0 + $0x8] sm:$0xf]
    %v27 = vld [vmem:[%s0 + $0xc] sm:$0xf]
    %v28 = vld [vmem:[%s1] sm:$0x3]
    %v29 = vld [vmem:[%s2] sm:$0x1]
    %v31 = vlaneseq
    %v32 = vshrl.u32 %v31, 7
    %v33 = vsub.s32 0, %v32
    %v34 = vrot.slane %v29, %v33
    %v40 = vunpack.c.l.b16 %v24
    %v41 = vunpack.c.l.b16 %v25
    %v42 = vunpack.c.l.b16 %v26
    %v43 = vunpack.c.l.b16 %v27
    %v44 = vpack.c.b16 %v41, %v40
    %v45 = vpack.c.b16 %v43, %v42
    %vm46 = vcmask 23552
    %v48 = vsel %vm46, %v44, 0
    %v51 = vsel %vm46, %v45, 0
    %vm53 = vcmask 1040384
    %vm54 = vcmask 1041408
    %v55 = vsel %vm53, 4294967295, 65535
    %v56 = vsel %vm54, %v55, 0
    %v58 = vand.u32 %v28, %v56
    %60 = vmatprep.subr.bf16.mxu0 0
    %61 = vmatpush1.bf16.msra.mxu0 %v58
    %62 = vmatprep.subr.bf16.mxu0 0
    %63 = vmatpush1.bf16.msra.mxu0 0
    %64 = vmatprep.subr.bf16.mxu0 0
    %65 = vmatpush1.bf16.msra.mxu0 0
    %66 = vmatprep.subr.bf16.mxu0 0
    %67 = vmatpush1.bf16.msra.mxu0 0
    %68 = vmatprep.subr.bf16.mxu0 0
    %69 = vmatpush1.bf16.msra.mxu0 0
    %70 = vmatprep.subr.bf16.mxu0 0
    %71 = vmatpush1.bf16.msra.mxu0 0
    %72 = vmatprep.subr.bf16.mxu0 0
    %73 = vmatpush1.bf16.msra.mxu0 0
    %74 = vmatprep.subr.bf16.mxu0 0
    %75 = vmatpush1.bf16.msra.mxu0 0
    %76 = vmatprep.subr.bf16.mxu0 0
    %77 = vmatpush1.bf16.msra.mxu0 0
    %78 = vmatprep.subr.bf16.mxu0 0
    %79 = vmatpush1.bf16.msra.mxu0 0
    %80 = vmatprep.subr.bf16.mxu0 0
    %81 = vmatpush1.bf16.msra.mxu0 0
    %82 = vmatprep.subr.bf16.mxu0 0
    %83 = vmatpush1.bf16.msra.mxu0 0
    %84 = vmatprep.subr.bf16.mxu0 0
    %85 = vmatpush1.bf16.msra.mxu0 0
    %86 = vmatprep.subr.bf16.mxu0 0
    %87 = vmatpush1.bf16.msra.mxu0 0
    %88 = vmatprep.subr.bf16.mxu0 0
    %89 = vmatpush1.bf16.msra.mxu0 0
    %90 = vmatprep.subr.bf16.mxu0 0
    %91 = vmatpush1.bf16.msra.mxu0 0
    %92 = vmatprep.mubr.bf16.mxu0 0
    %93 = vmatmul.mubr.bf16.gmra.mrb[0].mxu0 %v48
    %v94 = vpop.f32.mrb[0].mxu0
    %v95 = vadd.f32 %v34, %v94
    %v96 = vpop.f32.mrb[0].mxu0
    %v97 = vpop.f32.mrb[0].mxu0
    %v98 = vadd.f32 %v34, %v97
    %v99 = vpop.f32.mrb[0].mxu0
    %100 = vmatprep.mubr.bf16.mxu0 0
    %101 = vmatmul.mubr.bf16.gmra.mrb[0].mxu0 %v51
    %v102 = vpop.f32.mrb[0].mxu0
    %v103 = vadd.f32 %v34, %v102
    %v104 = vpop.f32.mrb[0].mxu0
    %v105 = vpop.f32.mrb[0].mxu0
    %v106 = vadd.f32 %v34, %v105
    %v107 = vpop.f32.mrb[0].mxu0
    %108 = vdwg.mxu0
    %v109 = vxor.u32 %v95, 2147483648
    %v110 = vxor.u32 %v98, 2147483648
    %v111 = vxor.u32 %v103, 2147483648
    %v112 = vxor.u32 %v106, 2147483648
    %v113 = vmul.f32 %v109, 1.442695
    %v114 = vpow.pop %v113
    %v115 = vmul.f32 %v110, 1.442695
    %v116 = vpow.pop %v115
    %v117 = vmul.f32 %v111, 1.442695
    %v118 = vpow.pop %v117
    %v119 = vmul.f32 %v112, 1.442695
    %v120 = vpow.pop %v119
    %v121 = vadd.f32 %v114, 1.0
    %v122 = vadd.f32 %v116, 1.0
    %v123 = vadd.f32 %v118, 1.0
    %v124 = vadd.f32 %v120, 1.0
    %v125 = vrcp.pop %v121
    %v126 = vmul.f32 1.0, %v125
    %v127 = vrcp.pop %v122
    %v128 = vmul.f32 1.0, %v127
    %v129 = vrcp.pop %v123
    %v130 = vmul.f32 1.0, %v129
    %v131 = vrcp.pop %v124
    %v132 = vmul.f32 1.0, %v131
    %v133 = vmul.f32 %v95, %v126
    %v134 = vmul.f32 %v98, %v128
    %v135 = vmul.f32 %v103, %v130
    %v136 = vmul.f32 %v106, %v132
    %v137 = vld [vmem:[%s3] sm:$0xf]
    %v138 = vld [vmem:[%s3 + $0x4] sm:$0xf]
    %v139 = vld [vmem:[%s4] sm:$0x1]
    %v140 = vpack.c.bf16 %v134, %v133
    %v141 = vpack.c.bf16 %v136, %v135
    %v143 = vlaneseq
    %v144 = vshrl.u32 %v143, 7
    %v145 = vsub.s32 0, %v144
    %v146 = vrot.slane %v139, %v145
    %v150 = vunpack.c.l.b16 %v137
    %v151 = vunpack.c.l.b16 %v138
    %v152 = vpack.c.b16 %v151, %v150
    %vm154 = vcmask 130048
    %v156 = vsel %vm154, %v140, 0
    %v159 = vsel %vm154, %v141, 0
    %161 = vmatprep.subr.bf16.mxu0 0
    %162 = vmatpush1.bf16.msra.mxu0 %v152
    %163 = vmatprep.subr.bf16.mxu0 0
    %164 = vmatpush1.bf16.msra.mxu0 0
    %165 = vmatprep.subr.bf16.mxu0 0
    %166 = vmatpush1.bf16.msra.mxu0 0
    %167 = vmatprep.subr.bf16.mxu0 0
    %168 = vmatpush1.bf16.msra.mxu0 0
    %169 = vmatprep.subr.bf16.mxu0 0
    %170 = vmatpush1.bf16.msra.mxu0 0
    %171 = vmatprep.subr.bf16.mxu0 0
    %172 = vmatpush1.bf16.msra.mxu0 0
    %173 = vmatprep.subr.bf16.mxu0 0
    %174 = vmatpush1.bf16.msra.mxu0 0
    %175 = vmatprep.subr.bf16.mxu0 0
    %176 = vmatpush1.bf16.msra.mxu0 0
    %177 = vmatprep.subr.bf16.mxu0 0
    %178 = vmatpush1.bf16.msra.mxu0 0
    %179 = vmatprep.subr.bf16.mxu0 0
    %180 = vmatpush1.bf16.msra.mxu0 0
    %181 = vmatprep.subr.bf16.mxu0 0
    %182 = vmatpush1.bf16.msra.mxu0 0
    %183 = vmatprep.subr.bf16.mxu0 0
    %184 = vmatpush1.bf16.msra.mxu0 0
    %185 = vmatprep.subr.bf16.mxu0 0
    %186 = vmatpush1.bf16.msra.mxu0 0
    %187 = vmatprep.subr.bf16.mxu0 0
    %188 = vmatpush1.bf16.msra.mxu0 0
    %189 = vmatprep.subr.bf16.mxu0 0
    %190 = vmatpush1.bf16.msra.mxu0 0
    %191 = vmatprep.subr.bf16.mxu0 0
    %192 = vmatpush1.bf16.msra.mxu0 0
    %193 = vmatprep.mubr.bf16.mxu0 0
    %194 = vmatmul.mubr.bf16.gmra.mrb[0].mxu0 %v156
    %v195 = vpop.f32.mrb[0].mxu0
    %v196 = vadd.f32 %v146, %v195
    %v197 = vpop.f32.mrb[0].mxu0
    %v198 = vpop.f32.mrb[0].mxu0
    %v199 = vadd.f32 %v146, %v198
    %v200 = vpop.f32.mrb[0].mxu0
    %201 = vmatprep.mubr.bf16.mxu0 0
    %202 = vmatmul.mubr.bf16.gmra.mrb[0].mxu0 %v159
    %v203 = vpop.f32.mrb[0].mxu0
    %v204 = vadd.f32 %v146, %v203
    %v205 = vpop.f32.mrb[0].mxu0
    %v206 = vpop.f32.mrb[0].mxu0
    %v207 = vadd.f32 %v146, %v206
    %v208 = vpop.f32.mrb[0].mxu0
    %209 = vdwg.mxu0
    %210 = vst.msk [vmem:[%s5] sm:$0xff] %vm154, %v196
    %211 = vst.msk [vmem:[%s5 + $0x8] sm:$0xff] %vm154, %v199
    %212 = vst.msk [vmem:[%s5 + $0x10] sm:$0xff] %vm154, %v204
    %213 = vst.msk [vmem:[%s5 + $0x18] sm:$0xff] %vm154, %v207
    %v214 = vlaneseq
    %v215 = vshrl.u32 %v214, 7
    %v216 = vadd.s32 %v215, 8
    %v217 = vadd.s32 %v215, 16
    %v218 = vadd.s32 %v215, 24
    %s219 = smul.u32 0, 32
    %v220 = vstv %s219
    %v221 = vadd.s32 %v215, %v220
    %v222 = vadd.s32 %v216, %v220
    %v223 = vadd.s32 %v217, %v220
    %v224 = vadd.s32 %v218, %v220
    %vm225 = vcmp.lt.s32.totalorder %v221, 32
    %vm226 = vcmp.lt.s32.totalorder %v222, 32
    %vm227 = vcmp.lt.s32.totalorder %v223, 32
    %vm228 = vcmp.lt.s32.totalorder %v224, 32
    %v229 = vsel %vm225, 1, 0
    %v230 = vsel %vm226, 1, 0
    %v231 = vsel %vm227, 1, 0
    %v232 = vsel %vm228, 1, 0
    %vm233 = vcmp.eq.s32.totalorder %v229, 1
    %vm234 = vcmp.eq.s32.totalorder %v230, 1
    %vm235 = vcmp.eq.s32.totalorder %v231, 1
    %vm236 = vcmp.eq.s32.totalorder %v232, 1
    %v237 = vsel %vm233, %v196, 0.0
    %v238 = vsel %vm234, %v199, 0.0
    %v239 = vsel %vm235, %v204, 0.0
    %v240 = vsel %vm236, %v207, 0.0
    %v241 = vsel %vm154, %v237, 0.0
    %v242 = vsel %vm154, %v238, 0.0
    %v243 = vadd.f32 %v241, %v242
    %v244 = vsel %vm154, %v239, 0.0
    %v245 = vadd.f32 %v243, %v244
    %v246 = vsel %vm154, %v240, 0.0
    %v247 = vadd.f32 %v245, %v246
    %v248 = vrot.slane %v247, 4
    %v249 = vadd.f32 %v247, %v248
    %v250 = vrot.slane %v249, 2
    %v251 = vadd.f32 %v249, %v250
    %v252 = vrot.slane %v251, 1
    %v253 = vadd.f32 %v251, %v252
    %v254 = vmul.f32 %v237, %v237
    %v255 = vmul.f32 %v238, %v238
    %v256 = vmul.f32 %v239, %v239
    %v257 = vmul.f32 %v240, %v240
    %v258 = vsel %vm154, %v254, 0.0
    %v259 = vsel %vm154, %v255, 0.0
    %v260 = vadd.f32 %v258, %v259
    %v261 = vsel %vm154, %v256, 0.0
    %v262 = vadd.f32 %v260, %v261
    %v263 = vsel %vm154, %v257, 0.0
    %v264 = vadd.f32 %v262, %v263
    %v265 = vrot.slane %v264, 4
    %v266 = vadd.f32 %v264, %v265
    %v267 = vrot.slane %v266, 2
    %v268 = vadd.f32 %v266, %v267
    %v269 = vrot.slane %v268, 1
    %v270 = vadd.f32 %v268, %v269
    %v271 = vsel %vm53, %v253, %v270
    %vm272 = vcmask 123904
    %273 = vst.msk [vmem:[#allocation2] sm:$0x3] %vm272, %v271
    // Predicated region
    $region22: #{tpu_custom_call.1} parent=1 // pred_check
      _
    $region23: #{tpu_custom_call.1} parent=1 // pred_check_branch
      %275 = sbr.rel (0) target = $region25
    $region24: #{tpu_custom_call.1} parent=1 // pred_region
      _
    $region25: #{tpu_custom_call.1} parent=1 // pred_fallthru
      _
    // Predicated region
    $region26: #{tpu_custom_call.1} parent=1 // pred_check
      _
    $region27: #{tpu_custom_call.1} parent=1 // pred_check_branch
      %277 = sbr.rel (0) target = $region29
    $region28: #{tpu_custom_call.1} parent=1 // pred_region
      %s279 = ssub.s32 32, 32
      %280 = vsyncadd [#allocation3], %s279
      %s282 = sshll.u32 [#allocation2], 4
      %s283 = int_to_ptr.vmem [resolvable:$true] %s282
      %285 = dma.vmem_to_hbm [thread:$0]  %s283, 32, %s6, [#allocation3]
    $region29: #{tpu_custom_call.1} parent=1 // pred_fallthru
      _
    // Predicated region
    $region30: #{tpu_custom_call.1} parent=1 // pred_check
      _
    $region31: #{tpu_custom_call.1} parent=1 // pred_check_branch
      %287 = sbr.rel (0) target = $region33
    $region32: #{tpu_custom_call.1} parent=1 // pred_region
      _
    $region33: #{tpu_custom_call.1} parent=1 // pred_fallthru
      _
    // Predicated region
    $region34: #{tpu_custom_call.1} parent=1 // pred_check
      _
    $region35: #{tpu_custom_call.1} parent=1 // pred_check_branch
      %289 = sbr.rel (0) target = $region37
    $region36: #{tpu_custom_call.1} parent=1 // pred_region
      %290 = dma.done [#allocation3], 32
    $region37: #{tpu_custom_call.1} parent=1 // pred_fallthru
      _
    %291 = vsyncpa [#allocation3], 1

</llo_original>
